<compile_context>
chip_gen: v5e
topology: v5e:2x2
jax: 0.10.0
libtpu: 0.0.40
codegen_flags: <defaults>
</compile_context>

<pallas_src>
import numpy as np
import jax
import jax.numpy as jnp
from jax.experimental import pallas as pl
from jax.experimental.pallas import tpu as pltpu

# ---------------- problem sizes (small, consistent with the module) ----------------
BS = 2                      # batch
ACTOR_DIM = 4               # actor_dim
LEVELS = 3                  # coarse-to-fine levels
BINS = 8                    # bins per level
D_LOW, D_FEAT, D_TIME = 6, 16, 1
HIDDEN = 32                 # MLP hidden width
AB = ACTOR_DIM * BINS                        # 32  (per-level Q width)
D_OBS = D_LOW + D_FEAT + D_TIME              # 23  level-invariant input features
D_OBS_PAD = 24                               # obs lane width (1 zero pad lane)
D_IN = D_OBS + LEVELS + ACTOR_DIM            # 30  PyTorch layer-1 fan-in
ROWS = 8                                     # one sublane tile of batch rows per level
N_STACK = LEVELS * ROWS                      # 24  stacked rows (8-aligned level blocks)
X_DIM = D_OBS_PAD + AB                       # 56  fused layer-1 fan-in
OUT_COLS = 128
OUT_QS = LEVELS * AB                         # 96
OUT_QSA = LEVELS * ACTOR_DIM                 # 12
INIT_LOW, INIT_HIGH = -1.0, 1.0              # fixed non-trainable buffers, baked in

# packed parameter slab layout (rows x 32 lanes)
SLAB_COLS = 32
R_W1 = 0                     # [0:56)    fused layer-1 weight
R_B1 = R_W1 + X_DIM          # [56:80)   per-level bias rows (b1 + w1_level[l])
R_W2 = R_B1 + N_STACK        # [80:112)  w2
R_W3 = R_W2 + HIDDEN         # [112:144) w3
R_B2 = R_W3 + HIDDEN         # [144:152) b2 (row 144)
R_B3 = R_B2 + ROWS           # [152:160) b3 (row 152)
SLAB_ROWS = R_B3 + ROWS      # 160
assert HIDDEN == SLAB_COLS and AB == SLAB_COLS


# ------------------------------- Pallas kernel -------------------------------------
def _c2f_critic_kernel(data_ref, p_ref, out_ref):
    f32 = jnp.float32
    hp = jax.lax.Precision.HIGHEST

    # ---- single data buffer: [obs (lanes 0:24) | action expanded per bin (24:56)] --
    obs = data_ref[:, 0:D_OBS_PAD]                 # (8, 24)
    act = data_ref[:, D_OBS_PAD:X_DIM]             # (8, 32): lane a*BINS+b = action[:, a]

    # ---- packed parameter slab: static, 8-row-aligned views -------------------------
    w1 = p_ref[R_W1:R_B1, :]        # (56, H) fused [obs | expanded low_high] weight
    b1 = p_ref[R_B1:R_W2, :]        # (24, H) per-level bias rows
    w2 = p_ref[R_W2:R_W3, :]        # (H, H)
    w3 = p_ref[R_W3:R_B2, :]        # (H, AB)
    b2 = p_ref[R_B2:R_B2 + 1, :]    # (1, H)
    b3 = p_ref[R_B3:R_B3 + 1, :]    # (1, AB)

    # ---- coarse-to-fine zoom chain, run directly at A*BINS lane width (VPU only) ----
    # encode_action + zoom_in with argmax == encoded idx; every 8-lane block carries
    # one action dim, so idx / low_high come out already block-expanded.
    low = jnp.full((ROWS, AB), INIT_LOW, f32)
    high = jnp.full((ROWS, AB), INIT_HIGH, f32)
    inv_bins = 1.0 / BINS                          # exact (power of two)
    lh_list, idx_list = [], []
    for _ in range(LEVELS):
        lh_list.append((low + high) * 0.5)
        sr = (high - low) * inv_bins
        idx = jnp.clip(jnp.floor((act - low) / sr), 0.0, BINS - 1.0)
        idx_list.append(idx)
        low = low + sr * idx
        high = low + sr

    # ---- stack levels into 8-row-aligned blocks, one fused MLP pass -----------------
    obs3 = jnp.concatenate([obs] * LEVELS, axis=0)          # (24, 24)  aligned copies
    lh3 = jnp.concatenate(lh_list, axis=0)                  # (24, 32)
    idx3 = jnp.concatenate(idx_list, axis=0)                # (24, 32)  integral floats

    x = jnp.concatenate([obs3, lh3], axis=1)                # (24, 56)
    h1 = jnp.maximum(jnp.dot(x, w1, precision=hp, preferred_element_type=f32) + b1, 0.0)
    h2 = jnp.maximum(jnp.dot(h1, w2, precision=hp, preferred_element_type=f32) + b2, 0.0)
    q = jnp.dot(h2, w3, precision=hp, preferred_element_type=f32) + b3      # (24, 32)

    # ---- torch.gather(qs, -1, idx): VPU integer one-hot + one 0/1 block-sum dot -----
    lane = jax.lax.broadcasted_iota(jnp.int32, (N_STACK, AB), 1)
    base = jnp.zeros_like(lane)
    for a in range(1, ACTOR_DIM):                 # base[j] = (j // BINS) * BINS
        base = base + (lane >= a * BINS).astype(jnp.int32)
    base = base * BINS
    onehot = (lane == idx3.astype(jnp.int32) + base).astype(f32)
    s_r = jax.lax.broadcasted_iota(jnp.int32, (AB, ACTOR_DIM), 0)
    s_c = jax.lax.broadcasted_iota(jnp.int32, (AB, ACTOR_DIM), 1)
    s_mat = ((s_r >= s_c * BINS) & (s_r < (s_c + 1) * BINS)).astype(f32)    # (32, 4)
    qsa = jnp.dot(q * onehot, s_mat, precision=hp, preferred_element_type=f32)  # (24, 4)

    # ---- single lane-dense (8, 128) store: [qs l0|l1|l2 | qsa l0|l1|l2 | zero pad] --
    pieces = [q[l * ROWS:(l + 1) * ROWS, :] for l in range(LEVELS)]
    pieces += [qsa[l * ROWS:(l + 1) * ROWS, :] for l in range(LEVELS)]
    pieces.append(jnp.zeros((ROWS, OUT_COLS - OUT_QS - OUT_QSA), f32))
    out_ref[...] = jnp.concatenate(pieces, axis=1)

    # TODO(synk): dueling branch (value_model) not implemented; default value_model=None.


# ------------------------------- param packing (outside jit) ------------------------
def pack_params(params):
    """Pack all weights/biases into one sublane-aligned (160, 32) f32 slab."""
    w1, b1 = params["w1"], params["b1"]
    w1_obs = w1[:D_OBS]                                  # (23, H)
    w1_lvl = w1[D_OBS:D_OBS + LEVELS]                    # (L, H)
    w1_lh = w1[D_OBS + LEVELS:D_OBS + LEVELS + ACTOR_DIM]  # (A, H)

    w1_obs_p = jnp.pad(w1_obs, ((0, D_OBS_PAD - D_OBS), (0, 0)))          # (24, H)
    # expanded low_high weight: only row a*BINS carries w1_lh[a]; the activation side
    # repeats each low_high value over its 8-lane block, so the dot is exact.
    w1_lh_e = jnp.zeros((AB, HIDDEN), jnp.float32).at[::BINS].set(w1_lh)  # (32, H)
    w1_cat = jnp.concatenate([w1_obs_p, w1_lh_e], axis=0)                 # (56, H)
    b1_rows = jnp.repeat(b1 + w1_lvl, ROWS, axis=0)                       # (24, H)
    b2_blk = jnp.pad(params["b2"], ((0, ROWS - 1), (0, 0)))               # (8, H)
    b3_blk = jnp.pad(params["b3"], ((0, ROWS - 1), (0, 0)))               # (8, AB)
    slab = jnp.concatenate(
        [w1_cat, b1_rows, params["w2"], params["w3"], b2_blk, b3_blk], axis=0)
    assert slab.shape == (SLAB_ROWS, SLAB_COLS), slab.shape
    return slab.astype(jnp.float32)


# ------------------------------- wrapper --------------------------------------------
@jax.jit
def c2f_critic_forward(packed_params, low_dim_obs, fused_view_feats, action, time_obs):
    bs = low_dim_obs.shape[0]
    assert bs <= ROWS

    # single lane-dense data buffer: [obs (23 + zero pad lane) | action repeated per bin]
    obs_cat = jnp.concatenate([low_dim_obs, fused_view_feats, time_obs], axis=-1)
    obs_p = jnp.pad(obs_cat, ((0, ROWS - bs), (0, D_OBS_PAD - D_OBS)))
    act_e = jnp.pad(jnp.repeat(action, BINS, axis=-1), ((0, ROWS - bs), (0, 0)))
    data = jnp.concatenate([obs_p, act_e], axis=-1).astype(jnp.float32)    # (8, 56)

    vmem = pl.BlockSpec(memory_space=pltpu.MemorySpace.VMEM)
    flops = 2 * N_STACK * (X_DIM * HIDDEN + HIDDEN * HIDDEN + HIDDEN * AB + AB * ACTOR_DIM)
    bytes_accessed = 4 * (ROWS * X_DIM + SLAB_ROWS * SLAB_COLS + ROWS * OUT_COLS)
    out = pl.pallas_call(
        _c2f_critic_kernel,
        out_shape=jax.ShapeDtypeStruct((ROWS, OUT_COLS), jnp.float32),
        in_specs=[vmem, vmem],
        out_specs=vmem,
        cost_estimate=pl.CostEstimate(flops=flops, transcendentals=0,
                                      bytes_accessed=bytes_accessed),
    )(data, packed_params)

    # Free slices/reshapes only -- no post-kernel transposes.
    qs = out[:bs, :OUT_QS].reshape(bs, LEVELS, ACTOR_DIM, BINS)
    qs_a = out[:bs, OUT_QS:OUT_QS + OUT_QSA].reshape(bs, LEVELS, ACTOR_DIM)
    return qs, qs_a


# ------------------------- pure-JAX reference (PyTorch semantics) --------------------
def reference_forward(params, low_dim_obs, fused_view_feats, action, time_obs):
    hp = jax.lax.Precision.HIGHEST
    bs = low_dim_obs.shape[0]
    w1, b1 = params["w1"], params["b1"][0]
    w2, b2 = params["w2"], params["b2"][0]
    w3, b3 = params["w3"], params["b3"][0]
    low = jnp.full((bs, ACTOR_DIM), INIT_LOW, jnp.float32)
    high = jnp.full((bs, ACTOR_DIM), INIT_HIGH, jnp.float32)

    # encode_action
    elow, ehigh = low, high
    idx_per_level = []
    for _ in range(LEVELS):
        sr = (ehigh - elow) / BINS
        idx = jnp.clip(jnp.floor((action - elow) / sr), 0.0, BINS - 1.0)
        idx_per_level.append(idx.astype(jnp.int32))
        elow = elow + sr * idx
        ehigh = elow + sr
    discrete_action = jnp.stack(idx_per_level, axis=-2)      # (bs, LEVELS, A)

    eye = jnp.eye(LEVELS, dtype=jnp.float32)
    qs_list, qsa_list = [], []
    for level in range(LEVELS):
        level_onehot = jnp.broadcast_to(eye[level][None, :], (bs, LEVELS))
        low_high = (low + high) / 2.0
        x = jnp.concatenate(
            [low_dim_obs, fused_view_feats, time_obs, level_onehot, low_high], axis=-1)
        h1 = jax.nn.relu(jnp.dot(x, w1, precision=hp) + b1)
        h2 = jax.nn.relu(jnp.dot(h1, w2, precision=hp) + b2)
        qs = (jnp.dot(h2, w3, precision=hp) + b3).reshape(bs, ACTOR_DIM, BINS)
        argmax_q = discrete_action[:, level, :]
        qs_a = jnp.take_along_axis(qs, argmax_q[..., None], axis=-1)[..., 0]
        qs_list.append(qs)
        qsa_list.append(qs_a)
        sr = (high - low) / BINS
        low = low + sr * argmax_q.astype(jnp.float32)
        high = low + sr
    return jnp.stack(qs_list, axis=1), jnp.stack(qsa_list, axis=1)


# ----------------------------------- main --------------------------------------------
if __name__ == "__main__":
    key = jax.random.PRNGKey(0)
    ks = jax.random.split(key, 8)

    # deterministic parameters (shapes follow the module; the real module zero-inits the
    # output layer via uniform_weight_init(0.0) -- small random values keep the test
    # non-degenerate).  initial_low/high are fixed non-trainable buffers, baked in.
    params = {
        "w1": jax.random.normal(ks[0], (D_IN, HIDDEN), jnp.float32) / np.sqrt(D_IN),
        "b1": 0.01 * jax.random.normal(ks[1], (1, HIDDEN), jnp.float32),
        "w2": jax.random.normal(ks[2], (HIDDEN, HIDDEN), jnp.float32) / np.sqrt(HIDDEN),
        "b2": 0.01 * jax.random.normal(ks[3], (1, HIDDEN), jnp.float32),
        "w3": jax.random.normal(ks[4], (HIDDEN, AB), jnp.float32) / np.sqrt(HIDDEN),
        "b3": 0.01 * jax.random.normal(ks[5], (1, AB), jnp.float32),
    }

    low_dim_obs = jax.random.normal(ks[6], (BS, D_LOW), jnp.float32)
    fused_view_feats = jax.random.normal(ks[7], (BS, D_FEAT), jnp.float32)
    time_obs = jnp.linspace(0.0, 1.0, BS, dtype=jnp.float32).reshape(BS, D_TIME)
    action = jax.random.uniform(jax.random.PRNGKey(1), (BS, ACTOR_DIM),
                                jnp.float32, minval=-1.0, maxval=1.0)

    packed = pack_params(params)   # hoisted out of the jitted forward (params are static)
    qs, qs_a = c2f_critic_forward(packed, low_dim_obs, fused_view_feats, action, time_obs)
    qs, qs_a = jax.block_until_ready((qs, qs_a))

    qs_ref, qs_a_ref = reference_forward(params, low_dim_obs, fused_view_feats,
                                         action, time_obs)

    assert qs.shape == (BS, LEVELS, ACTOR_DIM, BINS), qs.shape
    assert qs_a.shape == (BS, LEVELS, ACTOR_DIM), qs_a.shape
    np.testing.assert_allclose(np.asarray(qs), np.asarray(qs_ref), rtol=1e-4, atol=1e-4)
    np.testing.assert_allclose(np.asarray(qs_a), np.asarray(qs_a_ref), rtol=1e-4, atol=1e-4)

    print("KERNEL_OK")
</pallas_src>

<mosaic_0001>
module attributes {stable_mosaic.version = 11 : i64} {
  func.func @_c2f_critic_kernel(%arg0: memref<8x56xf32, #tpu.memory_space<vmem>>, %arg1: memref<160x32xf32, #tpu.memory_space<vmem>>, %arg2: memref<8x128xf32, #tpu.memory_space<vmem>>) attributes {dimension_semantics = [], scalar_prefetch = 0 : i64, scratch_operands = 0 : i64, tpu.core_type = #tpu.core_type<tc>} {
    %c0 = arith.constant 0 : index
    %c0_0 = arith.constant 0 : index
    %0 = vector.load %arg0[%c0, %c0_0] : memref<8x56xf32, #tpu.memory_space<vmem>>, vector<8x24xf32>
    %c0_1 = arith.constant 0 : index
    %c24 = arith.constant 24 : index
    %1 = vector.load %arg0[%c0_1, %c24] : memref<8x56xf32, #tpu.memory_space<vmem>>, vector<8x32xf32>
    %c0_2 = arith.constant 0 : index
    %c0_3 = arith.constant 0 : index
    %2 = vector.load %arg1[%c0_2, %c0_3] : memref<160x32xf32, #tpu.memory_space<vmem>>, vector<56x32xf32>
    %c56 = arith.constant 56 : index
    %c0_4 = arith.constant 0 : index
    %3 = vector.load %arg1[%c56, %c0_4] : memref<160x32xf32, #tpu.memory_space<vmem>>, vector<24x32xf32>
    %c80 = arith.constant 80 : index
    %c0_5 = arith.constant 0 : index
    %4 = vector.load %arg1[%c80, %c0_5] : memref<160x32xf32, #tpu.memory_space<vmem>>, vector<32x32xf32>
    %c112 = arith.constant 112 : index
    %c0_6 = arith.constant 0 : index
    %5 = vector.load %arg1[%c112, %c0_6] : memref<160x32xf32, #tpu.memory_space<vmem>>, vector<32x32xf32>
    %c144 = arith.constant 144 : index
    %c0_7 = arith.constant 0 : index
    %6 = vector.load %arg1[%c144, %c0_7] : memref<160x32xf32, #tpu.memory_space<vmem>>, vector<1x32xf32>
    %c152 = arith.constant 152 : index
    %c0_8 = arith.constant 0 : index
    %7 = vector.load %arg1[%c152, %c0_8] : memref<160x32xf32, #tpu.memory_space<vmem>>, vector<1x32xf32>
    %cst = arith.constant -1.000000e+00 : f32
    %8 = vector.broadcast %cst : f32 to vector<8x32xf32>
    %cst_9 = arith.constant 1.000000e+00 : f32
    %9 = vector.broadcast %cst_9 : f32 to vector<8x32xf32>
    %10 = arith.addf %8, %9 : vector<8x32xf32>
    %cst_10 = arith.constant 5.000000e-01 : f32
    %11 = vector.broadcast %cst_10 : f32 to vector<8x32xf32>
    %12 = arith.mulf %10, %11 : vector<8x32xf32>
    %13 = arith.subf %9, %8 : vector<8x32xf32>
    %cst_11 = arith.constant 1.250000e-01 : f32
    %14 = vector.broadcast %cst_11 : f32 to vector<8x32xf32>
    %15 = arith.mulf %13, %14 : vector<8x32xf32>
    %16 = arith.subf %1, %8 : vector<8x32xf32>
    %17 = arith.divf %16, %15 : vector<8x32xf32>
    %18 = math.floor %17 : vector<8x32xf32>
    %cst_12 = arith.constant 0.000000e+00 : f32
    %cst_13 = arith.constant 7.000000e+00 : f32
    %19 = vector.broadcast %cst_12 : f32 to vector<8x32xf32>
    %20 = arith.maximumf %19, %18 : vector<8x32xf32>
    %21 = vector.broadcast %cst_13 : f32 to vector<8x32xf32>
    %22 = arith.minimumf %21, %20 : vector<8x32xf32>
    %23 = arith.mulf %15, %22 : vector<8x32xf32>
    %24 = arith.addf %8, %23 : vector<8x32xf32>
    %25 = arith.addf %24, %15 : vector<8x32xf32>
    %26 = arith.addf %24, %25 : vector<8x32xf32>
    %cst_14 = arith.constant 5.000000e-01 : f32
    %27 = vector.broadcast %cst_14 : f32 to vector<8x32xf32>
    %28 = arith.mulf %26, %27 : vector<8x32xf32>
    %29 = arith.subf %25, %24 : vector<8x32xf32>
    %cst_15 = arith.constant 1.250000e-01 : f32
    %30 = vector.broadcast %cst_15 : f32 to vector<8x32xf32>
    %31 = arith.mulf %29, %30 : vector<8x32xf32>
    %32 = arith.subf %1, %24 : vector<8x32xf32>
    %33 = arith.divf %32, %31 : vector<8x32xf32>
    %34 = math.floor %33 : vector<8x32xf32>
    %cst_16 = arith.constant 0.000000e+00 : f32
    %cst_17 = arith.constant 7.000000e+00 : f32
    %35 = vector.broadcast %cst_16 : f32 to vector<8x32xf32>
    %36 = arith.maximumf %35, %34 : vector<8x32xf32>
    %37 = vector.broadcast %cst_17 : f32 to vector<8x32xf32>
    %38 = arith.minimumf %37, %36 : vector<8x32xf32>
    %39 = arith.mulf %31, %38 : vector<8x32xf32>
    %40 = arith.addf %24, %39 : vector<8x32xf32>
    %41 = arith.addf %40, %31 : vector<8x32xf32>
    %42 = arith.addf %40, %41 : vector<8x32xf32>
    %cst_18 = arith.constant 5.000000e-01 : f32
    %43 = vector.broadcast %cst_18 : f32 to vector<8x32xf32>
    %44 = arith.mulf %42, %43 : vector<8x32xf32>
    %45 = arith.subf %41, %40 : vector<8x32xf32>
    %cst_19 = arith.constant 1.250000e-01 : f32
    %46 = vector.broadcast %cst_19 : f32 to vector<8x32xf32>
    %47 = arith.mulf %45, %46 : vector<8x32xf32>
    %48 = arith.subf %1, %40 : vector<8x32xf32>
    %49 = arith.divf %48, %47 : vector<8x32xf32>
    %50 = math.floor %49 : vector<8x32xf32>
    %cst_20 = arith.constant 0.000000e+00 : f32
    %cst_21 = arith.constant 7.000000e+00 : f32
    %51 = vector.broadcast %cst_20 : f32 to vector<8x32xf32>
    %52 = arith.maximumf %51, %50 : vector<8x32xf32>
    %53 = vector.broadcast %cst_21 : f32 to vector<8x32xf32>
    %54 = arith.minimumf %53, %52 : vector<8x32xf32>
    %55 = tpu.concatenate %0, %0, %0 in 0 : vector<8x24xf32>, vector<8x24xf32>, vector<8x24xf32> -> vector<24x24xf32>
    %56 = tpu.concatenate %12, %28, %44 in 0 : vector<8x32xf32>, vector<8x32xf32>, vector<8x32xf32> -> vector<24x32xf32>
    %57 = tpu.concatenate %22, %38, %54 in 0 : vector<8x32xf32>, vector<8x32xf32>, vector<8x32xf32> -> vector<24x32xf32>
    %58 = tpu.concatenate %55, %56 in 1 : vector<24x24xf32>, vector<24x32xf32> -> vector<24x56xf32>
    %cst_22 = arith.constant dense<0.000000e+00> : vector<24x32xf32>
    %59 = tpu.matmul %58, %2, %cst_22 {dimension_numbers = #tpu.dot_dimension_numbers<[1], [0], [0], [1], [0, 0, 1, 1], [], []>, precision = #tpu.contract_precision<fp32>} : vector<24x56xf32>, vector<56x32xf32>, vector<24x32xf32> -> vector<24x32xf32>
    %60 = arith.addf %59, %3 : vector<24x32xf32>
    %cst_23 = arith.constant 0.000000e+00 : f32
    %61 = vector.broadcast %cst_23 : f32 to vector<24x32xf32>
    %62 = arith.maximumf %60, %61 : vector<24x32xf32>
    %cst_24 = arith.constant dense<0.000000e+00> : vector<24x32xf32>
    %63 = tpu.matmul %62, %4, %cst_24 {dimension_numbers = #tpu.dot_dimension_numbers<[1], [0], [0], [1], [0, 0, 1, 1], [], []>, precision = #tpu.contract_precision<fp32>} : vector<24x32xf32>, vector<32x32xf32>, vector<24x32xf32> -> vector<24x32xf32>
    %64 = vector.broadcast %6 : vector<1x32xf32> to vector<24x32xf32>
    %65 = arith.addf %63, %64 : vector<24x32xf32>
    %cst_25 = arith.constant 0.000000e+00 : f32
    %66 = vector.broadcast %cst_25 : f32 to vector<24x32xf32>
    %67 = arith.maximumf %65, %66 : vector<24x32xf32>
    %cst_26 = arith.constant dense<0.000000e+00> : vector<24x32xf32>
    %68 = tpu.matmul %67, %5, %cst_26 {dimension_numbers = #tpu.dot_dimension_numbers<[1], [0], [0], [1], [0, 0, 1, 1], [], []>, precision = #tpu.contract_precision<fp32>} : vector<24x32xf32>, vector<32x32xf32>, vector<24x32xf32> -> vector<24x32xf32>
    %69 = vector.broadcast %7 : vector<1x32xf32> to vector<24x32xf32>
    %70 = arith.addf %68, %69 : vector<24x32xf32>
    %71 = tpu.iota {dimensions = array<i32: 1>} : vector<24x32xi32>
    %c0_i32 = arith.constant 0 : i32
    %72 = vector.broadcast %c0_i32 : i32 to vector<24x32xi32>
    %c8_i32 = arith.constant 8 : i32
    %73 = vector.broadcast %c8_i32 : i32 to vector<24x32xi32>
    %74 = arith.cmpi sge, %71, %73 : vector<24x32xi32>
    %75 = arith.extui %74 : vector<24x32xi1> to vector<24x32xi32>
    %76 = arith.addi %72, %75 : vector<24x32xi32>
    %c16_i32 = arith.constant 16 : i32
    %77 = vector.broadcast %c16_i32 : i32 to vector<24x32xi32>
    %78 = arith.cmpi sge, %71, %77 : vector<24x32xi32>
    %79 = arith.extui %78 : vector<24x32xi1> to vector<24x32xi32>
    %80 = arith.addi %76, %79 : vector<24x32xi32>
    %c24_i32 = arith.constant 24 : i32
    %81 = vector.broadcast %c24_i32 : i32 to vector<24x32xi32>
    %82 = arith.cmpi sge, %71, %81 : vector<24x32xi32>
    %83 = arith.extui %82 : vector<24x32xi1> to vector<24x32xi32>
    %84 = arith.addi %80, %83 : vector<24x32xi32>
    %c8_i32_27 = arith.constant 8 : i32
    %85 = vector.broadcast %c8_i32_27 : i32 to vector<24x32xi32>
    %86 = arith.muli %84, %85 : vector<24x32xi32>
    %87 = arith.fptosi %57 : vector<24x32xf32> to vector<24x32xi32>
    %88 = arith.addi %87, %86 : vector<24x32xi32>
    %89 = arith.cmpi eq, %71, %88 : vector<24x32xi32>
    %90 = arith.extui %89 : vector<24x32xi1> to vector<24x32xi32>
    %91 = arith.sitofp %90 : vector<24x32xi32> to vector<24x32xf32>
    %92 = tpu.iota {dimensions = array<i32: 0>} : vector<32x4xi32>
    %93 = tpu.iota {dimensions = array<i32: 1>} : vector<32x4xi32>
    %c8_i32_28 = arith.constant 8 : i32
    %94 = vector.broadcast %c8_i32_28 : i32 to vector<32x4xi32>
    %95 = arith.muli %93, %94 : vector<32x4xi32>
    %96 = arith.cmpi sge, %92, %95 : vector<32x4xi32>
    %c1_i32 = arith.constant 1 : i32
    %97 = vector.broadcast %c1_i32 : i32 to vector<32x4xi32>
    %98 = arith.addi %93, %97 : vector<32x4xi32>
    %c8_i32_29 = arith.constant 8 : i32
    %99 = vector.broadcast %c8_i32_29 : i32 to vector<32x4xi32>
    %100 = arith.muli %98, %99 : vector<32x4xi32>
    %101 = arith.cmpi slt, %92, %100 : vector<32x4xi32>
    %102 = arith.andi %96, %101 : vector<32x4xi1>
    %103 = arith.extui %102 : vector<32x4xi1> to vector<32x4xi32>
    %104 = arith.sitofp %103 : vector<32x4xi32> to vector<32x4xf32>
    %105 = arith.mulf %70, %91 : vector<24x32xf32>
    %cst_30 = arith.constant dense<0.000000e+00> : vector<24x4xf32>
    %106 = tpu.matmul %105, %104, %cst_30 {dimension_numbers = #tpu.dot_dimension_numbers<[1], [0], [0], [1], [0, 0, 1, 1], [], []>, precision = #tpu.contract_precision<fp32>} : vector<24x32xf32>, vector<32x4xf32>, vector<24x4xf32> -> vector<24x4xf32>
    %107 = vector.extract_strided_slice %70 {offsets = [0, 0], sizes = [8, 32], strides = [1, 1]} : vector<24x32xf32> to vector<8x32xf32>
    %108 = vector.extract_strided_slice %70 {offsets = [8, 0], sizes = [8, 32], strides = [1, 1]} : vector<24x32xf32> to vector<8x32xf32>
    %109 = vector.extract_strided_slice %70 {offsets = [16, 0], sizes = [8, 32], strides = [1, 1]} : vector<24x32xf32> to vector<8x32xf32>
    %110 = vector.extract_strided_slice %106 {offsets = [0, 0], sizes = [8, 4], strides = [1, 1]} : vector<24x4xf32> to vector<8x4xf32>
    %111 = vector.extract_strided_slice %106 {offsets = [8, 0], sizes = [8, 4], strides = [1, 1]} : vector<24x4xf32> to vector<8x4xf32>
    %112 = vector.extract_strided_slice %106 {offsets = [16, 0], sizes = [8, 4], strides = [1, 1]} : vector<24x4xf32> to vector<8x4xf32>
    %cst_31 = arith.constant 0.000000e+00 : f32
    %113 = vector.broadcast %cst_31 : f32 to vector<8x20xf32>
    %114 = tpu.concatenate %107, %108, %109, %110, %111, %112, %113 in 1 : vector<8x32xf32>, vector<8x32xf32>, vector<8x32xf32>, vector<8x4xf32>, vector<8x4xf32>, vector<8x4xf32>, vector<8x20xf32> -> vector<8x128xf32>
    %c0_32 = arith.constant 0 : index
    %c0_33 = arith.constant 0 : index
    %115 = vector.load %arg2[%c0_32, %c0_33] : memref<8x128xf32, #tpu.memory_space<vmem>>, vector<8x128xf32>
    tpu.vector_store %arg2[%c0_32, %c0_33], %114 {strides = array<i32>} : memref<8x128xf32, #tpu.memory_space<vmem>>, vector<8x128xf32>,
    return
  }
}

</mosaic_0001>

<llo_original>
// kernel: c2f_critic_forward.1
$region0: #{c2f_critic_forward.1}
  #allocation0 [shape = 'u32[]', space=smem, size = 0x4, offset = 0x4, fixed_abs, tag = 'smem constant byte address 0x4 - core index']
  #allocation1 [shape = 'u32[72,128]{1,0:T(1,128)}', space=vmem, size = 0x9000, scoped, tag = 'internal scratch']
  %s0 = inlined_call_operand.vmem [shape: f32[8,56], index: 0, kind: input, shape index: {}]
  %s1 = inlined_call_operand.vmem [shape: f32[160,32], index: 1, kind: input, shape index: {}]
  %s2 = inlined_call_operand.vmem [shape: f32[8,128], index: 2, kind: output, shape index: {}]
  %s3 = sld [smem:[#allocation0]]
  $region18: #{c2f_critic_forward.1} parent=0
    _
  %s5 = ssub.s32 1, %s3
  %s6 = scalar_select 0, %s5, %s3
  // Predicated region
  $region2: #{c2f_critic_forward.1} parent=0 // pred_check
    _
  $region3: #{c2f_critic_forward.1} parent=0 // pred_check_branch
    %8 = sbr.rel (0) target = $region5
  $region4: #{c2f_critic_forward.1} parent=0 // pred_region
    _
  $region5: #{c2f_critic_forward.1} parent=0 // pred_fallthru
    _
  // Predicated region
  $region6: #{c2f_critic_forward.1} parent=0 // pred_check
    _
  $region7: #{c2f_critic_forward.1} parent=0 // pred_check_branch
    %10 = sbr.rel (0) target = $region9
  $region8: #{c2f_critic_forward.1} parent=0 // pred_region
    _
  $region9: #{c2f_critic_forward.1} parent=0 // pred_fallthru
    _
  %v11 = vld [vmem:[%s0] sm:$0xff]
  %v12 = vld [vmem:[%s1] sm:$0xff]
  %v13 = vld [vmem:[%s1 + $0x8] sm:$0xff]
  %v14 = vld [vmem:[%s1 + $0x10] sm:$0xff]
  %v15 = vld [vmem:[%s1 + $0x18] sm:$0xff]
  %v16 = vld [vmem:[%s1 + $0x20] sm:$0xff]
  %v17 = vld [vmem:[%s1 + $0x28] sm:$0xff]
  %v18 = vld [vmem:[%s1 + $0x30] sm:$0xff]
  %v19 = vld [vmem:[%s1 + $0x38] sm:$0xff]
  %v20 = vld [vmem:[%s1 + $0x40] sm:$0xff]
  %v21 = vld [vmem:[%s1 + $0x48] sm:$0xff]
  %v22 = vld [vmem:[%s1 + $0x50] sm:$0xff]
  %v23 = vld [vmem:[%s1 + $0x58] sm:$0xff]
  %v24 = vld [vmem:[%s1 + $0x60] sm:$0xff]
  %v25 = vld [vmem:[%s1 + $0x68] sm:$0xff]
  %v26 = vld [vmem:[%s1 + $0x70] sm:$0xff]
  %v27 = vld [vmem:[%s1 + $0x78] sm:$0xff]
  %v28 = vld [vmem:[%s1 + $0x80] sm:$0xff]
  %v29 = vld [vmem:[%s1 + $0x88] sm:$0xff]
  %v30 = vld [vmem:[%s1 + $0x90] sm:$0x1]
  %v31 = vld [vmem:[%s1 + $0x98] sm:$0x1]
  %v32 = vsub.f32 %v11, -1.0
  %v33 = vrcp.pop 0.25
  %v34 = vmul.f32 0.25, %v33
  %v35 = vsub.f32 1.0, %v34
  %v36 = vmul.f32 %v33, %v35
  %v37 = vadd.f32 %v33, %v36
  %vm38 = vweird.f32 %v33
  %v39 = vsel %vm38, %v33, %v37
  %v40 = vmul.f32 %v32, %v39
  %v41 = vfloor.f32 %v40
  %v42 = vmax.f32 %v41, 0.0
  %v43 = vmin.f32 %v42, 7.0
  %v44 = vmul.f32 %v43, 0.25
  %v45 = vadd.f32 %v44, -1.0
  %v46 = vadd.f32 %v45, 0.25
  %v47 = vadd.f32 %v45, %v46
  %v48 = vmul.f32 %v47, 0.5
  %v49 = vsub.f32 %v46, %v45
  %v50 = vmul.f32 %v49, 0.125
  %v51 = vsub.f32 %v11, %v45
  %v52 = vrcp.pop %v50
  %v53 = vmul.f32 %v50, %v52
  %v54 = vsub.f32 1.0, %v53
  %v55 = vmul.f32 %v52, %v54
  %v56 = vadd.f32 %v52, %v55
  %vm57 = vweird.f32 %v50
  %vm58 = vweird.f32 %v52
  %vm59 = vmor %vm57, %vm58
  %v60 = vsel %vm59, %v52, %v56
  %v61 = vand.u32 2147483647, %v50
  %vm62 = vcmp.eq.f32.partialorder %v61, 8.507059e+37
  %v63 = vand.u32 %v50, 2147483648
  %v64 = vor.u32 1.1754944e-38, %v63
  %v65 = vsel %vm62, %v64, %v60
  %v66 = vmul.f32 %v51, %v65
  %v67 = vfloor.f32 %v66
  %v68 = vmax.f32 %v67, 0.0
  %v69 = vmin.f32 %v68, 7.0
  %v70 = vmul.f32 %v50, %v69
  %v71 = vadd.f32 %v45, %v70
  %v72 = vadd.f32 %v71, %v50
  %v73 = vadd.f32 %v71, %v72
  %v74 = vmul.f32 %v73, 0.5
  %v75 = vsub.f32 %v72, %v71
  %v76 = vmul.f32 %v75, 0.125
  %v77 = vsub.f32 %v11, %v71
  %v78 = vrcp.pop %v76
  %v79 = vmul.f32 %v76, %v78
  %v80 = vsub.f32 1.0, %v79
  %v81 = vmul.f32 %v78, %v80
  %v82 = vadd.f32 %v78, %v81
  %vm83 = vweird.f32 %v76
  %vm84 = vweird.f32 %v78
  %vm85 = vmor %vm83, %vm84
  %v86 = vsel %vm85, %v78, %v82
  %v87 = vand.u32 2147483647, %v76
  %vm88 = vcmp.eq.f32.partialorder %v87, 8.507059e+37
  %v89 = vand.u32 %v76, 2147483648
  %v90 = vor.u32 1.1754944e-38, %v89
  %v91 = vsel %vm88, %v90, %v86
  %v92 = vmul.f32 %v77, %v91
  %v93 = vfloor.f32 %v92
  %v94 = vmax.f32 %v93, 0.0
  %v95 = vmin.f32 %v94, 7.0
  %97 = vrot.lane.b32.xlu0 %v48, 104
  %v98 = vpop.permute.xlu0 %97
  %100 = vrot.lane.b32.xlu0 %v74, 104
  %v101 = vpop.permute.xlu0 %100
  %103 = vrot.lane.b32.xlu0 0.0, 24
  %v104 = vpop.permute.xlu0 %103
  %105 = vrot.lane.b32.xlu0 %v98, 24
  %v106 = vpop.permute.xlu0 %105
  %107 = vrot.lane.b32.xlu0 %v101, 24
  %v108 = vpop.permute.xlu0 %107
  %vm112 = vcmask 195584
  %v113 = vsel %vm112, %v11, %v104
  %v114 = vsel %vm112, %v11, %v106
  %v115 = vsel %vm112, %v11, %v108
  %vm116 = vcmask 457728
  %v118 = vsel %vm116, %v113, 0
  %v121 = vsel %vm116, %v114, 0
  %v124 = vsel %vm116, %v115, 0
  %126 = vmatpush.msra.mxu0 0.0
  %127 = vmatpush.msra.mxu0 0.0
  %128 = vmatpush.msra.mxu0 0.0
  %129 = vmatpush.msra.mxu0 0.0
  %130 = vmatpush.msra.mxu0 0.0
  %131 = vmatpush.msra.mxu0 0.0
  %132 = vmatpush.msra.mxu0 0.0
  %133 = vmatpush.msra.mxu0 0.0
  %134 = vmatpush.msra.mxu0 0.0
  %v135 = vand.u32 %v18, 4294901760
  %136 = vmatpush.msra.mxu0 %v135
  %v137 = vand.u32 %v17, 4294901760
  %138 = vmatpush.msra.mxu0 %v137
  %v139 = vand.u32 %v16, 4294901760
  %140 = vmatpush.msra.mxu0 %v139
  %v141 = vand.u32 %v15, 4294901760
  %142 = vmatpush.msra.mxu0 %v141
  %v143 = vand.u32 %v14, 4294901760
  %144 = vmatpush.msra.mxu0 %v143
  %v145 = vand.u32 %v13, 4294901760
  %146 = vmatpush.msra.mxu0 %v145
  %v147 = vand.u32 %v12, 4294901760
  %148 = vmatpush.msra.mxu0 %v147
  %v149 = vand.u32 %v118, 4294901760
  %v150 = vsub.f32 %v118, %v149
  %v151 = vand.u32 %v150, 4294901760
  %v152 = vsub.f32 %v150, %v151
  %v153 = vand.u32 %v152, 4294901760
  %154 = vmatmul.f32.gmra.mxu0 %v153
  %v155 = vpop.f32.mrf.mxu0
  %v156 = vadd.f32 %v19, %v155
  %v157 = vand.u32 %v121, 4294901760
  %v158 = vsub.f32 %v121, %v157
  %v159 = vand.u32 %v158, 4294901760
  %v160 = vsub.f32 %v158, %v159
  %v161 = vand.u32 %v160, 4294901760
  %162 = vmatmul.f32.gmra.mxu0 %v161
  %v163 = vpop.f32.mrf.mxu0
  %v164 = vadd.f32 %v20, %v163
  %v165 = vand.u32 %v124, 4294901760
  %v166 = vsub.f32 %v124, %v165
  %v167 = vand.u32 %v166, 4294901760
  %v168 = vsub.f32 %v166, %v167
  %v169 = vand.u32 %v168, 4294901760
  %170 = vmatmul.f32.gmra.mxu0 %v169
  %v171 = vpop.f32.mrf.mxu0
  %v172 = vadd.f32 %v21, %v171
  %173 = vdwg.mxu0
  %174 = vmatpush.msra.mxu0 0.0
  %175 = vmatpush.msra.mxu0 0.0
  %176 = vmatpush.msra.mxu0 0.0
  %177 = vmatpush.msra.mxu0 0.0
  %178 = vmatpush.msra.mxu0 0.0
  %179 = vmatpush.msra.mxu0 0.0
  %180 = vmatpush.msra.mxu0 0.0
  %181 = vmatpush.msra.mxu0 0.0
  %182 = vmatpush.msra.mxu0 0.0
  %v183 = vand.u32 %v18, 4294901760
  %v184 = vsub.f32 %v18, %v183
  %v185 = vand.u32 %v184, 4294901760
  %v186 = vsub.f32 %v184, %v185
  %v187 = vand.u32 %v186, 4294901760
  %188 = vmatpush.msra.mxu0 %v187
  %v189 = vand.u32 %v17, 4294901760
  %v190 = vsub.f32 %v17, %v189
  %v191 = vand.u32 %v190, 4294901760
  %v192 = vsub.f32 %v190, %v191
  %v193 = vand.u32 %v192, 4294901760
  %194 = vmatpush.msra.mxu0 %v193
  %v195 = vand.u32 %v16, 4294901760
  %v196 = vsub.f32 %v16, %v195
  %v197 = vand.u32 %v196, 4294901760
  %v198 = vsub.f32 %v196, %v197
  %v199 = vand.u32 %v198, 4294901760
  %200 = vmatpush.msra.mxu0 %v199
  %v201 = vand.u32 %v15, 4294901760
  %v202 = vsub.f32 %v15, %v201
  %v203 = vand.u32 %v202, 4294901760
  %v204 = vsub.f32 %v202, %v203
  %v205 = vand.u32 %v204, 4294901760
  %206 = vmatpush.msra.mxu0 %v205
  %v207 = vand.u32 %v14, 4294901760
  %v208 = vsub.f32 %v14, %v207
  %v209 = vand.u32 %v208, 4294901760
  %v210 = vsub.f32 %v208, %v209
  %v211 = vand.u32 %v210, 4294901760
  %212 = vmatpush.msra.mxu0 %v211
  %v213 = vand.u32 %v13, 4294901760
  %v214 = vsub.f32 %v13, %v213
  %v215 = vand.u32 %v214, 4294901760
  %v216 = vsub.f32 %v214, %v215
  %v217 = vand.u32 %v216, 4294901760
  %218 = vmatpush.msra.mxu0 %v217
  %v219 = vand.u32 %v12, 4294901760
  %v220 = vsub.f32 %v12, %v219
  %v221 = vand.u32 %v220, 4294901760
  %v222 = vsub.f32 %v220, %v221
  %v223 = vand.u32 %v222, 4294901760
  %224 = vmatpush.msra.mxu0 %v223
  %v225 = vand.u32 %v118, 4294901760
  %226 = vmatmul.f32.gmra.mxu0 %v225
  %v227 = vpop.f32.mrf.mxu0
  %v228 = vadd.f32 %v156, %v227
  %v229 = vand.u32 %v121, 4294901760
  %230 = vmatmul.f32.gmra.mxu0 %v229
  %v231 = vpop.f32.mrf.mxu0
  %v232 = vadd.f32 %v164, %v231
  %v233 = vand.u32 %v124, 4294901760
  %234 = vmatmul.f32.gmra.mxu0 %v233
  %v235 = vpop.f32.mrf.mxu0
  %v236 = vadd.f32 %v172, %v235
  %237 = vdwg.mxu0
  %238 = vmatpush.msra.mxu0 0.0
  %239 = vmatpush.msra.mxu0 0.0
  %240 = vmatpush.msra.mxu0 0.0
  %241 = vmatpush.msra.mxu0 0.0
  %242 = vmatpush.msra.mxu0 0.0
  %243 = vmatpush.msra.mxu0 0.0
  %244 = vmatpush.msra.mxu0 0.0
  %245 = vmatpush.msra.mxu0 0.0
  %246 = vmatpush.msra.mxu0 0.0
  %v247 = vand.u32 %v18, 4294901760
  %v248 = vsub.f32 %v18, %v247
  %249 = vmatpush.msra.mxu0 %v248
  %v250 = vand.u32 %v17, 4294901760
  %v251 = vsub.f32 %v17, %v250
  %252 = vmatpush.msra.mxu0 %v251
  %v253 = vand.u32 %v16, 4294901760
  %v254 = vsub.f32 %v16, %v253
  %255 = vmatpush.msra.mxu0 %v254
  %v256 = vand.u32 %v15, 4294901760
  %v257 = vsub.f32 %v15, %v256
  %258 = vmatpush.msra.mxu0 %v257
  %v259 = vand.u32 %v14, 4294901760
  %v260 = vsub.f32 %v14, %v259
  %261 = vmatpush.msra.mxu0 %v260
  %v262 = vand.u32 %v13, 4294901760
  %v263 = vsub.f32 %v13, %v262
  %264 = vmatpush.msra.mxu0 %v263
  %v265 = vand.u32 %v12, 4294901760
  %v266 = vsub.f32 %v12, %v265
  %267 = vmatpush.msra.mxu0 %v266
  %v268 = vand.u32 %v118, 4294901760
  %v269 = vsub.f32 %v118, %v268
  %270 = vmatmul.f32.gmra.mxu0 %v269
  %v271 = vpop.f32.mrf.mxu0
  %v272 = vadd.f32 %v228, %v271
  %v273 = vand.u32 %v121, 4294901760
  %v274 = vsub.f32 %v121, %v273
  %275 = vmatmul.f32.gmra.mxu0 %v274
  %v276 = vpop.f32.mrf.mxu0
  %v277 = vadd.f32 %v232, %v276
  %v278 = vand.u32 %v124, 4294901760
  %v279 = vsub.f32 %v124, %v278
  %280 = vmatmul.f32.gmra.mxu0 %v279
  %v281 = vpop.f32.mrf.mxu0
  %v282 = vadd.f32 %v236, %v281
  %283 = vdwg.mxu0
  %284 = vmatpush.msra.mxu0 0.0
  %285 = vmatpush.msra.mxu0 0.0
  %286 = vmatpush.msra.mxu0 0.0
  %287 = vmatpush.msra.mxu0 0.0
  %288 = vmatpush.msra.mxu0 0.0
  %289 = vmatpush.msra.mxu0 0.0
  %290 = vmatpush.msra.mxu0 0.0
  %291 = vmatpush.msra.mxu0 0.0
  %292 = vmatpush.msra.mxu0 0.0
  %v293 = vand.u32 %v18, 4294901760
  %294 = vmatpush.msra.mxu0 %v293
  %v295 = vand.u32 %v17, 4294901760
  %296 = vmatpush.msra.mxu0 %v295
  %v297 = vand.u32 %v16, 4294901760
  %298 = vmatpush.msra.mxu0 %v297
  %v299 = vand.u32 %v15, 4294901760
  %300 = vmatpush.msra.mxu0 %v299
  %v301 = vand.u32 %v14, 4294901760
  %302 = vmatpush.msra.mxu0 %v301
  %v303 = vand.u32 %v13, 4294901760
  %304 = vmatpush.msra.mxu0 %v303
  %v305 = vand.u32 %v12, 4294901760
  %306 = vmatpush.msra.mxu0 %v305
  %v307 = vand.u32 %v118, 4294901760
  %v308 = vsub.f32 %v118, %v307
  %v309 = vand.u32 %v308, 4294901760
  %310 = vmatmul.f32.gmra.mxu0 %v309
  %v311 = vpop.f32.mrf.mxu0
  %v312 = vadd.f32 %v272, %v311
  %v313 = vand.u32 %v121, 4294901760
  %v314 = vsub.f32 %v121, %v313
  %v315 = vand.u32 %v314, 4294901760
  %316 = vmatmul.f32.gmra.mxu0 %v315
  %v317 = vpop.f32.mrf.mxu0
  %v318 = vadd.f32 %v277, %v317
  %v319 = vand.u32 %v124, 4294901760
  %v320 = vsub.f32 %v124, %v319
  %v321 = vand.u32 %v320, 4294901760
  %322 = vmatmul.f32.gmra.mxu0 %v321
  %v323 = vpop.f32.mrf.mxu0
  %v324 = vadd.f32 %v282, %v323
  %325 = vdwg.mxu0
  %326 = vmatpush.msra.mxu0 0.0
  %327 = vmatpush.msra.mxu0 0.0
  %328 = vmatpush.msra.mxu0 0.0
  %329 = vmatpush.msra.mxu0 0.0
  %330 = vmatpush.msra.mxu0 0.0
  %331 = vmatpush.msra.mxu0 0.0
  %332 = vmatpush.msra.mxu0 0.0
  %333 = vmatpush.msra.mxu0 0.0
  %334 = vmatpush.msra.mxu0 0.0
  %v335 = vand.u32 %v18, 4294901760
  %v336 = vsub.f32 %v18, %v335
  %v337 = vand.u32 %v336, 4294901760
  %338 = vmatpush.msra.mxu0 %v337
  %v339 = vand.u32 %v17, 4294901760
  %v340 = vsub.f32 %v17, %v339
  %v341 = vand.u32 %v340, 4294901760
  %342 = vmatpush.msra.mxu0 %v341
  %v343 = vand.u32 %v16, 4294901760
  %v344 = vsub.f32 %v16, %v343
  %v345 = vand.u32 %v344, 4294901760
  %346 = vmatpush.msra.mxu0 %v345
  %v347 = vand.u32 %v15, 4294901760
  %v348 = vsub.f32 %v15, %v347
  %v349 = vand.u32 %v348, 4294901760
  %350 = vmatpush.msra.mxu0 %v349
  %v351 = vand.u32 %v14, 4294901760
  %v352 = vsub.f32 %v14, %v351
  %v353 = vand.u32 %v352, 4294901760
  %354 = vmatpush.msra.mxu0 %v353
  %v355 = vand.u32 %v13, 4294901760
  %v356 = vsub.f32 %v13, %v355
  %v357 = vand.u32 %v356, 4294901760
  %358 = vmatpush.msra.mxu0 %v357
  %v359 = vand.u32 %v12, 4294901760
  %v360 = vsub.f32 %v12, %v359
  %v361 = vand.u32 %v360, 4294901760
  %362 = vmatpush.msra.mxu0 %v361
  %v363 = vand.u32 %v118, 4294901760
  %364 = vmatmul.f32.gmra.mxu0 %v363
  %v365 = vpop.f32.mrf.mxu0
  %v366 = vadd.f32 %v312, %v365
  %v367 = vand.u32 %v121, 4294901760
  %368 = vmatmul.f32.gmra.mxu0 %v367
  %v369 = vpop.f32.mrf.mxu0
  %v370 = vadd.f32 %v318, %v369
  %v371 = vand.u32 %v124, 4294901760
  %372 = vmatmul.f32.gmra.mxu0 %v371
  %v373 = vpop.f32.mrf.mxu0
  %v374 = vadd.f32 %v324, %v373
  %375 = vdwg.mxu0
  %376 = vmatpush.msra.mxu0 0.0
  %377 = vmatpush.msra.mxu0 0.0
  %378 = vmatpush.msra.mxu0 0.0
  %379 = vmatpush.msra.mxu0 0.0
  %380 = vmatpush.msra.mxu0 0.0
  %381 = vmatpush.msra.mxu0 0.0
  %382 = vmatpush.msra.mxu0 0.0
  %383 = vmatpush.msra.mxu0 0.0
  %384 = vmatpush.msra.mxu0 0.0
  %v385 = vand.u32 %v18, 4294901760
  %386 = vmatpush.msra.mxu0 %v385
  %v387 = vand.u32 %v17, 4294901760
  %388 = vmatpush.msra.mxu0 %v387
  %v389 = vand.u32 %v16, 4294901760
  %390 = vmatpush.msra.mxu0 %v389
  %v391 = vand.u32 %v15, 4294901760
  %392 = vmatpush.msra.mxu0 %v391
  %v393 = vand.u32 %v14, 4294901760
  %394 = vmatpush.msra.mxu0 %v393
  %v395 = vand.u32 %v13, 4294901760
  %396 = vmatpush.msra.mxu0 %v395
  %v397 = vand.u32 %v12, 4294901760
  %398 = vmatpush.msra.mxu0 %v397
  %v399 = vand.u32 %v118, 4294901760
  %400 = vmatmul.f32.gmra.mxu0 %v399
  %v401 = vpop.f32.mrf.mxu0
  %v402 = vadd.f32 %v366, %v401
  %v403 = vand.u32 %v121, 4294901760
  %404 = vmatmul.f32.gmra.mxu0 %v403
  %v405 = vpop.f32.mrf.mxu0
  %v406 = vadd.f32 %v370, %v405
  %v407 = vand.u32 %v124, 4294901760
  %408 = vmatmul.f32.gmra.mxu0 %v407
  %v409 = vpop.f32.mrf.mxu0
  %v410 = vadd.f32 %v374, %v409
  %411 = vdwg.mxu0
  %v412 = vmax.f32 %v402, 0.0
  %v413 = vmax.f32 %v406, 0.0
  %v414 = vmax.f32 %v410, 0.0
  %v415 = vperm.slane %v30, 0
  %vm416 = vcmask 261120
  %v418 = vsel %vm416, %v412, 0
  %v421 = vsel %vm416, %v413, 0
  %v424 = vsel %vm416, %v414, 0
  %426 = vmatpush.msra.mxu0 0.0
  %427 = vmatpush.msra.mxu0 0.0
  %428 = vmatpush.msra.mxu0 0.0
  %429 = vmatpush.msra.mxu0 0.0
  %430 = vmatpush.msra.mxu0 0.0
  %431 = vmatpush.msra.mxu0 0.0
  %432 = vmatpush.msra.mxu0 0.0
  %433 = vmatpush.msra.mxu0 0.0
  %434 = vmatpush.msra.mxu0 0.0
  %435 = vmatpush.msra.mxu0 0.0
  %436 = vmatpush.msra.mxu0 0.0
  %437 = vmatpush.msra.mxu0 0.0
  %v438 = vand.u32 %v25, 4294901760
  %439 = vmatpush.msra.mxu0 %v438
  %v440 = vand.u32 %v24, 4294901760
  %441 = vmatpush.msra.mxu0 %v440
  %v442 = vand.u32 %v23, 4294901760
  %443 = vmatpush.msra.mxu0 %v442
  %v444 = vand.u32 %v22, 4294901760
  %445 = vmatpush.msra.mxu0 %v444
  %v446 = vand.u32 %v418, 4294901760
  %v447 = vsub.f32 %v418, %v446
  %v448 = vand.u32 %v447, 4294901760
  %v449 = vsub.f32 %v447, %v448
  %v450 = vand.u32 %v449, 4294901760
  %451 = vmatmul.f32.gmra.mxu0 %v450
  %v452 = vpop.f32.mrf.mxu0
  %v453 = vadd.f32 %v415, %v452
  %v454 = vand.u32 %v421, 4294901760
  %v455 = vsub.f32 %v421, %v454
  %v456 = vand.u32 %v455, 4294901760
  %v457 = vsub.f32 %v455, %v456
  %v458 = vand.u32 %v457, 4294901760
  %459 = vmatmul.f32.gmra.mxu0 %v458
  %v460 = vpop.f32.mrf.mxu0
  %v461 = vadd.f32 %v415, %v460
  %v462 = vand.u32 %v424, 4294901760
  %v463 = vsub.f32 %v424, %v462
  %v464 = vand.u32 %v463, 4294901760
  %v465 = vsub.f32 %v463, %v464
  %v466 = vand.u32 %v465, 4294901760
  %467 = vmatmul.f32.gmra.mxu0 %v466
  %v468 = vpop.f32.mrf.mxu0
  %v469 = vadd.f32 %v415, %v468
  %470 = vdwg.mxu0
  %471 = vmatpush.msra.mxu0 0.0
  %472 = vmatpush.msra.mxu0 0.0
  %473 = vmatpush.msra.mxu0 0.0
  %474 = vmatpush.msra.mxu0 0.0
  %475 = vmatpush.msra.mxu0 0.0
  %476 = vmatpush.msra.mxu0 0.0
  %477 = vmatpush.msra.mxu0 0.0
  %478 = vmatpush.msra.mxu0 0.0
  %479 = vmatpush.msra.mxu0 0.0
  %480 = vmatpush.msra.mxu0 0.0
  %481 = vmatpush.msra.mxu0 0.0
  %482 = vmatpush.msra.mxu0 0.0
  %v483 = vand.u32 %v25, 4294901760
  %v484 = vsub.f32 %v25, %v483
  %v485 = vand.u32 %v484, 4294901760
  %v486 = vsub.f32 %v484, %v485
  %v487 = vand.u32 %v486, 4294901760
  %488 = vmatpush.msra.mxu0 %v487
  %v489 = vand.u32 %v24, 4294901760
  %v490 = vsub.f32 %v24, %v489
  %v491 = vand.u32 %v490, 4294901760
  %v492 = vsub.f32 %v490, %v491
  %v493 = vand.u32 %v492, 4294901760
  %494 = vmatpush.msra.mxu0 %v493
  %v495 = vand.u32 %v23, 4294901760
  %v496 = vsub.f32 %v23, %v495
  %v497 = vand.u32 %v496, 4294901760
  %v498 = vsub.f32 %v496, %v497
  %v499 = vand.u32 %v498, 4294901760
  %500 = vmatpush.msra.mxu0 %v499
  %v501 = vand.u32 %v22, 4294901760
  %v502 = vsub.f32 %v22, %v501
  %v503 = vand.u32 %v502, 4294901760
  %v504 = vsub.f32 %v502, %v503
  %v505 = vand.u32 %v504, 4294901760
  %506 = vmatpush.msra.mxu0 %v505
  %v507 = vand.u32 %v418, 4294901760
  %508 = vmatmul.f32.gmra.mxu0 %v507
  %v509 = vpop.f32.mrf.mxu0
  %v510 = vadd.f32 %v453, %v509
  %v511 = vand.u32 %v421, 4294901760
  %512 = vmatmul.f32.gmra.mxu0 %v511
  %v513 = vpop.f32.mrf.mxu0
  %v514 = vadd.f32 %v461, %v513
  %v515 = vand.u32 %v424, 4294901760
  %516 = vmatmul.f32.gmra.mxu0 %v515
  %v517 = vpop.f32.mrf.mxu0
  %v518 = vadd.f32 %v469, %v517
  %519 = vdwg.mxu0
  %520 = vmatpush.msra.mxu0 0.0
  %521 = vmatpush.msra.mxu0 0.0
  %522 = vmatpush.msra.mxu0 0.0
  %523 = vmatpush.msra.mxu0 0.0
  %524 = vmatpush.msra.mxu0 0.0
  %525 = vmatpush.msra.mxu0 0.0
  %526 = vmatpush.msra.mxu0 0.0
  %527 = vmatpush.msra.mxu0 0.0
  %528 = vmatpush.msra.mxu0 0.0
  %529 = vmatpush.msra.mxu0 0.0
  %530 = vmatpush.msra.mxu0 0.0
  %531 = vmatpush.msra.mxu0 0.0
  %v532 = vand.u32 %v25, 4294901760
  %v533 = vsub.f32 %v25, %v532
  %534 = vmatpush.msra.mxu0 %v533
  %v535 = vand.u32 %v24, 4294901760
  %v536 = vsub.f32 %v24, %v535
  %537 = vmatpush.msra.mxu0 %v536
  %v538 = vand.u32 %v23, 4294901760
  %v539 = vsub.f32 %v23, %v538
  %540 = vmatpush.msra.mxu0 %v539
  %v541 = vand.u32 %v22, 4294901760
  %v542 = vsub.f32 %v22, %v541
  %543 = vmatpush.msra.mxu0 %v542
  %v544 = vand.u32 %v418, 4294901760
  %v545 = vsub.f32 %v418, %v544
  %546 = vmatmul.f32.gmra.mxu0 %v545
  %v547 = vpop.f32.mrf.mxu0
  %v548 = vadd.f32 %v510, %v547
  %v549 = vand.u32 %v421, 4294901760
  %v550 = vsub.f32 %v421, %v549
  %551 = vmatmul.f32.gmra.mxu0 %v550
  %v552 = vpop.f32.mrf.mxu0
  %v553 = vadd.f32 %v514, %v552
  %v554 = vand.u32 %v424, 4294901760
  %v555 = vsub.f32 %v424, %v554
  %556 = vmatmul.f32.gmra.mxu0 %v555
  %v557 = vpop.f32.mrf.mxu0
  %v558 = vadd.f32 %v518, %v557
  %559 = vdwg.mxu0
  %560 = vmatpush.msra.mxu0 0.0
  %561 = vmatpush.msra.mxu0 0.0
  %562 = vmatpush.msra.mxu0 0.0
  %563 = vmatpush.msra.mxu0 0.0
  %564 = vmatpush.msra.mxu0 0.0
  %565 = vmatpush.msra.mxu0 0.0
  %566 = vmatpush.msra.mxu0 0.0
  %567 = vmatpush.msra.mxu0 0.0
  %568 = vmatpush.msra.mxu0 0.0
  %569 = vmatpush.msra.mxu0 0.0
  %570 = vmatpush.msra.mxu0 0.0
  %571 = vmatpush.msra.mxu0 0.0
  %v572 = vand.u32 %v25, 4294901760
  %573 = vmatpush.msra.mxu0 %v572
  %v574 = vand.u32 %v24, 4294901760
  %575 = vmatpush.msra.mxu0 %v574
  %v576 = vand.u32 %v23, 4294901760
  %577 = vmatpush.msra.mxu0 %v576
  %v578 = vand.u32 %v22, 4294901760
  %579 = vmatpush.msra.mxu0 %v578
  %v580 = vand.u32 %v418, 4294901760
  %v581 = vsub.f32 %v418, %v580
  %v582 = vand.u32 %v581, 4294901760
  %583 = vmatmul.f32.gmra.mxu0 %v582
  %v584 = vpop.f32.mrf.mxu0
  %v585 = vadd.f32 %v548, %v584
  %v586 = vand.u32 %v421, 4294901760
  %v587 = vsub.f32 %v421, %v586
  %v588 = vand.u32 %v587, 4294901760
  %589 = vmatmul.f32.gmra.mxu0 %v588
  %v590 = vpop.f32.mrf.mxu0
  %v591 = vadd.f32 %v553, %v590
  %v592 = vand.u32 %v424, 4294901760
  %v593 = vsub.f32 %v424, %v592
  %v594 = vand.u32 %v593, 4294901760
  %595 = vmatmul.f32.gmra.mxu0 %v594
  %v596 = vpop.f32.mrf.mxu0
  %v597 = vadd.f32 %v558, %v596
  %598 = vdwg.mxu0
  %599 = vmatpush.msra.mxu0 0.0
  %600 = vmatpush.msra.mxu0 0.0
  %601 = vmatpush.msra.mxu0 0.0
  %602 = vmatpush.msra.mxu0 0.0
  %603 = vmatpush.msra.mxu0 0.0
  %604 = vmatpush.msra.mxu0 0.0
  %605 = vmatpush.msra.mxu0 0.0
  %606 = vmatpush.msra.mxu0 0.0
  %607 = vmatpush.msra.mxu0 0.0
  %608 = vmatpush.msra.mxu0 0.0
  %609 = vmatpush.msra.mxu0 0.0
  %610 = vmatpush.msra.mxu0 0.0
  %v611 = vand.u32 %v25, 4294901760
  %v612 = vsub.f32 %v25, %v611
  %v613 = vand.u32 %v612, 4294901760
  %614 = vmatpush.msra.mxu0 %v613
  %v615 = vand.u32 %v24, 4294901760
  %v616 = vsub.f32 %v24, %v615
  %v617 = vand.u32 %v616, 4294901760
  %618 = vmatpush.msra.mxu0 %v617
  %v619 = vand.u32 %v23, 4294901760
  %v620 = vsub.f32 %v23, %v619
  %v621 = vand.u32 %v620, 4294901760
  %622 = vmatpush.msra.mxu0 %v621
  %v623 = vand.u32 %v22, 4294901760
  %v624 = vsub.f32 %v22, %v623
  %v625 = vand.u32 %v624, 4294901760
  %626 = vmatpush.msra.mxu0 %v625
  %v627 = vand.u32 %v418, 4294901760
  %628 = vmatmul.f32.gmra.mxu0 %v627
  %v629 = vpop.f32.mrf.mxu0
  %v630 = vadd.f32 %v585, %v629
  %v631 = vand.u32 %v421, 4294901760
  %632 = vmatmul.f32.gmra.mxu0 %v631
  %v633 = vpop.f32.mrf.mxu0
  %v634 = vadd.f32 %v591, %v633
  %v635 = vand.u32 %v424, 4294901760
  %636 = vmatmul.f32.gmra.mxu0 %v635
  %v637 = vpop.f32.mrf.mxu0
  %v638 = vadd.f32 %v597, %v637
  %639 = vdwg.mxu0
  %640 = vmatpush.msra.mxu0 0.0
  %641 = vmatpush.msra.mxu0 0.0
  %642 = vmatpush.msra.mxu0 0.0
  %643 = vmatpush.msra.mxu0 0.0
  %644 = vmatpush.msra.mxu0 0.0
  %645 = vmatpush.msra.mxu0 0.0
  %646 = vmatpush.msra.mxu0 0.0
  %647 = vmatpush.msra.mxu0 0.0
  %648 = vmatpush.msra.mxu0 0.0
  %649 = vmatpush.msra.mxu0 0.0
  %650 = vmatpush.msra.mxu0 0.0
  %651 = vmatpush.msra.mxu0 0.0
  %v652 = vand.u32 %v25, 4294901760
  %653 = vmatpush.msra.mxu0 %v652
  %v654 = vand.u32 %v24, 4294901760
  %655 = vmatpush.msra.mxu0 %v654
  %v656 = vand.u32 %v23, 4294901760
  %657 = vmatpush.msra.mxu0 %v656
  %v658 = vand.u32 %v22, 4294901760
  %659 = vmatpush.msra.mxu0 %v658
  %v660 = vand.u32 %v418, 4294901760
  %661 = vmatmul.f32.gmra.mxu0 %v660
  %v662 = vpop.f32.mrf.mxu0
  %v663 = vadd.f32 %v630, %v662
  %v664 = vand.u32 %v421, 4294901760
  %665 = vmatmul.f32.gmra.mxu0 %v664
  %v666 = vpop.f32.mrf.mxu0
  %v667 = vadd.f32 %v634, %v666
  %v668 = vand.u32 %v424, 4294901760
  %669 = vmatmul.f32.gmra.mxu0 %v668
  %v670 = vpop.f32.mrf.mxu0
  %v671 = vadd.f32 %v638, %v670
  %672 = vdwg.mxu0
  %v673 = vmax.f32 %v663, 0.0
  %v674 = vmax.f32 %v667, 0.0
  %v675 = vmax.f32 %v671, 0.0
  %v676 = vperm.slane %v31, 0
  %v678 = vsel %vm416, %v673, 0
  %v681 = vsel %vm416, %v674, 0
  %v684 = vsel %vm416, %v675, 0
  %686 = vmatpush.msra.mxu0 0.0
  %687 = vmatpush.msra.mxu0 0.0
  %688 = vmatpush.msra.mxu0 0.0
  %689 = vmatpush.msra.mxu0 0.0
  %690 = vmatpush.msra.mxu0 0.0
  %691 = vmatpush.msra.mxu0 0.0
  %692 = vmatpush.msra.mxu0 0.0
  %693 = vmatpush.msra.mxu0 0.0
  %694 = vmatpush.msra.mxu0 0.0
  %695 = vmatpush.msra.mxu0 0.0
  %696 = vmatpush.msra.mxu0 0.0
  %697 = vmatpush.msra.mxu0 0.0
  %v698 = vand.u32 %v29, 4294901760
  %699 = vmatpush.msra.mxu0 %v698
  %v700 = vand.u32 %v28, 4294901760
  %701 = vmatpush.msra.mxu0 %v700
  %v702 = vand.u32 %v27, 4294901760
  %703 = vmatpush.msra.mxu0 %v702
  %v704 = vand.u32 %v26, 4294901760
  %705 = vmatpush.msra.mxu0 %v704
  %v706 = vand.u32 %v678, 4294901760
  %v707 = vsub.f32 %v678, %v706
  %v708 = vand.u32 %v707, 4294901760
  %v709 = vsub.f32 %v707, %v708
  %v710 = vand.u32 %v709, 4294901760
  %711 = vmatmul.f32.gmra.mxu0 %v710
  %v712 = vpop.f32.mrf.mxu0
  %v713 = vadd.f32 %v676, %v712
  %v714 = vand.u32 %v681, 4294901760
  %v715 = vsub.f32 %v681, %v714
  %v716 = vand.u32 %v715, 4294901760
  %v717 = vsub.f32 %v715, %v716
  %v718 = vand.u32 %v717, 4294901760
  %719 = vmatmul.f32.gmra.mxu0 %v718
  %v720 = vpop.f32.mrf.mxu0
  %v721 = vadd.f32 %v676, %v720
  %v722 = vand.u32 %v684, 4294901760
  %v723 = vsub.f32 %v684, %v722
  %v724 = vand.u32 %v723, 4294901760
  %v725 = vsub.f32 %v723, %v724
  %v726 = vand.u32 %v725, 4294901760
  %727 = vmatmul.f32.gmra.mxu0 %v726
  %v728 = vpop.f32.mrf.mxu0
  %v729 = vadd.f32 %v676, %v728
  %730 = vdwg.mxu0
  %731 = vmatpush.msra.mxu0 0.0
  %732 = vmatpush.msra.mxu0 0.0
  %733 = vmatpush.msra.mxu0 0.0
  %734 = vmatpush.msra.mxu0 0.0
  %735 = vmatpush.msra.mxu0 0.0
  %736 = vmatpush.msra.mxu0 0.0
  %737 = vmatpush.msra.mxu0 0.0
  %738 = vmatpush.msra.mxu0 0.0
  %739 = vmatpush.msra.mxu0 0.0
  %740 = vmatpush.msra.mxu0 0.0
  %741 = vmatpush.msra.mxu0 0.0
  %742 = vmatpush.msra.mxu0 0.0
  %v743 = vand.u32 %v29, 4294901760
  %v744 = vsub.f32 %v29, %v743
  %v745 = vand.u32 %v744, 4294901760
  %v746 = vsub.f32 %v744, %v745
  %v747 = vand.u32 %v746, 4294901760
  %748 = vmatpush.msra.mxu0 %v747
  %v749 = vand.u32 %v28, 4294901760
  %v750 = vsub.f32 %v28, %v749
  %v751 = vand.u32 %v750, 4294901760
  %v752 = vsub.f32 %v750, %v751
  %v753 = vand.u32 %v752, 4294901760
  %754 = vmatpush.msra.mxu0 %v753
  %v755 = vand.u32 %v27, 4294901760
  %v756 = vsub.f32 %v27, %v755
  %v757 = vand.u32 %v756, 4294901760
  %v758 = vsub.f32 %v756, %v757
  %v759 = vand.u32 %v758, 4294901760
  %760 = vmatpush.msra.mxu0 %v759
  %v761 = vand.u32 %v26, 4294901760
  %v762 = vsub.f32 %v26, %v761
  %v763 = vand.u32 %v762, 4294901760
  %v764 = vsub.f32 %v762, %v763
  %v765 = vand.u32 %v764, 4294901760
  %766 = vmatpush.msra.mxu0 %v765
  %v767 = vand.u32 %v678, 4294901760
  %768 = vmatmul.f32.gmra.mxu0 %v767
  %v769 = vpop.f32.mrf.mxu0
  %v770 = vadd.f32 %v713, %v769
  %v771 = vand.u32 %v681, 4294901760
  %772 = vmatmul.f32.gmra.mxu0 %v771
  %v773 = vpop.f32.mrf.mxu0
  %v774 = vadd.f32 %v721, %v773
  %v775 = vand.u32 %v684, 4294901760
  %776 = vmatmul.f32.gmra.mxu0 %v775
  %v777 = vpop.f32.mrf.mxu0
  %v778 = vadd.f32 %v729, %v777
  %779 = vdwg.mxu0
  %780 = vmatpush.msra.mxu0 0.0
  %781 = vmatpush.msra.mxu0 0.0
  %782 = vmatpush.msra.mxu0 0.0
  %783 = vmatpush.msra.mxu0 0.0
  %784 = vmatpush.msra.mxu0 0.0
  %785 = vmatpush.msra.mxu0 0.0
  %786 = vmatpush.msra.mxu0 0.0
  %787 = vmatpush.msra.mxu0 0.0
  %788 = vmatpush.msra.mxu0 0.0
  %789 = vmatpush.msra.mxu0 0.0
  %790 = vmatpush.msra.mxu0 0.0
  %791 = vmatpush.msra.mxu0 0.0
  %v792 = vand.u32 %v29, 4294901760
  %v793 = vsub.f32 %v29, %v792
  %794 = vmatpush.msra.mxu0 %v793
  %v795 = vand.u32 %v28, 4294901760
  %v796 = vsub.f32 %v28, %v795
  %797 = vmatpush.msra.mxu0 %v796
  %v798 = vand.u32 %v27, 4294901760
  %v799 = vsub.f32 %v27, %v798
  %800 = vmatpush.msra.mxu0 %v799
  %v801 = vand.u32 %v26, 4294901760
  %v802 = vsub.f32 %v26, %v801
  %803 = vmatpush.msra.mxu0 %v802
  %v804 = vand.u32 %v678, 4294901760
  %v805 = vsub.f32 %v678, %v804
  %806 = vmatmul.f32.gmra.mxu0 %v805
  %v807 = vpop.f32.mrf.mxu0
  %v808 = vadd.f32 %v770, %v807
  %v809 = vand.u32 %v681, 4294901760
  %v810 = vsub.f32 %v681, %v809
  %811 = vmatmul.f32.gmra.mxu0 %v810
  %v812 = vpop.f32.mrf.mxu0
  %v813 = vadd.f32 %v774, %v812
  %v814 = vand.u32 %v684, 4294901760
  %v815 = vsub.f32 %v684, %v814
  %816 = vmatmul.f32.gmra.mxu0 %v815
  %v817 = vpop.f32.mrf.mxu0
  %v818 = vadd.f32 %v778, %v817
  %819 = vdwg.mxu0
  %820 = vmatpush.msra.mxu0 0.0
  %821 = vmatpush.msra.mxu0 0.0
  %822 = vmatpush.msra.mxu0 0.0
  %823 = vmatpush.msra.mxu0 0.0
  %824 = vmatpush.msra.mxu0 0.0
  %825 = vmatpush.msra.mxu0 0.0
  %826 = vmatpush.msra.mxu0 0.0
  %827 = vmatpush.msra.mxu0 0.0
  %828 = vmatpush.msra.mxu0 0.0
  %829 = vmatpush.msra.mxu0 0.0
  %830 = vmatpush.msra.mxu0 0.0
  %831 = vmatpush.msra.mxu0 0.0
  %v832 = vand.u32 %v29, 4294901760
  %833 = vmatpush.msra.mxu0 %v832
  %v834 = vand.u32 %v28, 4294901760
  %835 = vmatpush.msra.mxu0 %v834
  %v836 = vand.u32 %v27, 4294901760
  %837 = vmatpush.msra.mxu0 %v836
  %v838 = vand.u32 %v26, 4294901760
  %839 = vmatpush.msra.mxu0 %v838
  %v840 = vand.u32 %v678, 4294901760
  %v841 = vsub.f32 %v678, %v840
  %v842 = vand.u32 %v841, 4294901760
  %843 = vmatmul.f32.gmra.mxu0 %v842
  %v844 = vpop.f32.mrf.mxu0
  %v845 = vadd.f32 %v808, %v844
  %v846 = vand.u32 %v681, 4294901760
  %v847 = vsub.f32 %v681, %v846
  %v848 = vand.u32 %v847, 4294901760
  %849 = vmatmul.f32.gmra.mxu0 %v848
  %v850 = vpop.f32.mrf.mxu0
  %v851 = vadd.f32 %v813, %v850
  %v852 = vand.u32 %v684, 4294901760
  %v853 = vsub.f32 %v684, %v852
  %v854 = vand.u32 %v853, 4294901760
  %855 = vmatmul.f32.gmra.mxu0 %v854
  %v856 = vpop.f32.mrf.mxu0
  %v857 = vadd.f32 %v818, %v856
  %858 = vdwg.mxu0
  %859 = vmatpush.msra.mxu0 0.0
  %860 = vmatpush.msra.mxu0 0.0
  %861 = vmatpush.msra.mxu0 0.0
  %862 = vmatpush.msra.mxu0 0.0
  %863 = vmatpush.msra.mxu0 0.0
  %864 = vmatpush.msra.mxu0 0.0
  %865 = vmatpush.msra.mxu0 0.0
  %866 = vmatpush.msra.mxu0 0.0
  %867 = vmatpush.msra.mxu0 0.0
  %868 = vmatpush.msra.mxu0 0.0
  %869 = vmatpush.msra.mxu0 0.0
  %870 = vmatpush.msra.mxu0 0.0
  %v871 = vand.u32 %v29, 4294901760
  %v872 = vsub.f32 %v29, %v871
  %v873 = vand.u32 %v872, 4294901760
  %874 = vmatpush.msra.mxu0 %v873
  %v875 = vand.u32 %v28, 4294901760
  %v876 = vsub.f32 %v28, %v875
  %v877 = vand.u32 %v876, 4294901760
  %878 = vmatpush.msra.mxu0 %v877
  %v879 = vand.u32 %v27, 4294901760
  %v880 = vsub.f32 %v27, %v879
  %v881 = vand.u32 %v880, 4294901760
  %882 = vmatpush.msra.mxu0 %v881
  %v883 = vand.u32 %v26, 4294901760
  %v884 = vsub.f32 %v26, %v883
  %v885 = vand.u32 %v884, 4294901760
  %886 = vmatpush.msra.mxu0 %v885
  %v887 = vand.u32 %v678, 4294901760
  %888 = vmatmul.f32.gmra.mxu0 %v887
  %v889 = vpop.f32.mrf.mxu0
  %v890 = vadd.f32 %v845, %v889
  %v891 = vand.u32 %v681, 4294901760
  %892 = vmatmul.f32.gmra.mxu0 %v891
  %v893 = vpop.f32.mrf.mxu0
  %v894 = vadd.f32 %v851, %v893
  %v895 = vand.u32 %v684, 4294901760
  %896 = vmatmul.f32.gmra.mxu0 %v895
  %v897 = vpop.f32.mrf.mxu0
  %v898 = vadd.f32 %v857, %v897
  %899 = vdwg.mxu0
  %900 = vmatpush.msra.mxu0 0.0
  %901 = vmatpush.msra.mxu0 0.0
  %902 = vmatpush.msra.mxu0 0.0
  %903 = vmatpush.msra.mxu0 0.0
  %904 = vmatpush.msra.mxu0 0.0
  %905 = vmatpush.msra.mxu0 0.0
  %906 = vmatpush.msra.mxu0 0.0
  %907 = vmatpush.msra.mxu0 0.0
  %908 = vmatpush.msra.mxu0 0.0
  %909 = vmatpush.msra.mxu0 0.0
  %910 = vmatpush.msra.mxu0 0.0
  %911 = vmatpush.msra.mxu0 0.0
  %v912 = vand.u32 %v29, 4294901760
  %913 = vmatpush.msra.mxu0 %v912
  %v914 = vand.u32 %v28, 4294901760
  %915 = vmatpush.msra.mxu0 %v914
  %v916 = vand.u32 %v27, 4294901760
  %917 = vmatpush.msra.mxu0 %v916
  %v918 = vand.u32 %v26, 4294901760
  %919 = vmatpush.msra.mxu0 %v918
  %v920 = vand.u32 %v678, 4294901760
  %921 = vmatmul.f32.gmra.mxu0 %v920
  %v922 = vpop.f32.mrf.mxu0
  %v923 = vadd.f32 %v890, %v922
  %v924 = vand.u32 %v681, 4294901760
  %925 = vmatmul.f32.gmra.mxu0 %v924
  %v926 = vpop.f32.mrf.mxu0
  %v927 = vadd.f32 %v894, %v926
  %v928 = vand.u32 %v684, 4294901760
  %929 = vmatmul.f32.gmra.mxu0 %v928
  %v930 = vpop.f32.mrf.mxu0
  %v931 = vadd.f32 %v898, %v930
  %932 = vdwg.mxu0
  %v933 = vlaneseq
  %v934 = vand.u32 %v933, 127
  %vm935 = vcmp.ge.s32.totalorder %v934, 8
  %v936 = vsel %vm935, 1, 0
  %vm937 = vcmp.ge.s32.totalorder %v934, 16
  %v938 = vsel %vm937, 1, 0
  %v939 = vadd.s32 %v936, %v938
  %vm940 = vcmp.ge.s32.totalorder %v934, 24
  %v941 = vsel %vm940, 1, 0
  %v942 = vadd.s32 %v939, %v941
  %v943 = vmul.u32 %v942, 8
  %v944 = vcvt.f32.s32.to.zero.pseudo %v43
  %v945 = vcvt.f32.s32.to.zero.pseudo %v69
  %v946 = vcvt.f32.s32.to.zero.pseudo %v95
  %947 = vrot.lane.b32.xlu0 %v943, 24
  %v948 = vpop.permute.xlu0 %947
  %v949 = vadd.s32 %v944, %v948
  %v950 = vadd.s32 %v945, %v948
  %v951 = vadd.s32 %v946, %v948
  %952 = vrot.lane.b32.xlu0 %v949, 104
  %v953 = vpop.permute.xlu0 %952
  %954 = vrot.lane.b32.xlu0 %v950, 104
  %v955 = vpop.permute.xlu0 %954
  %956 = vrot.lane.b32.xlu0 %v951, 104
  %v957 = vpop.permute.xlu0 %956
  %vm958 = vcmp.eq.s32.totalorder %v934, %v953
  %vm959 = vcmp.eq.s32.totalorder %v934, %v955
  %vm960 = vcmp.eq.s32.totalorder %v934, %v957
  %v961 = vsel %vm958, 1, 0
  %v962 = vsel %vm959, 1, 0
  %v963 = vsel %vm960, 1, 0
  %v964 = vcvt.s32.f32 %v961
  %v965 = vcvt.s32.f32 %v962
  %v966 = vcvt.s32.f32 %v963
  %v967 = vlaneseq
  %v968 = vshrl.u32 %v967, 7
  %v969 = vadd.s32 %v968, 8
  %v970 = vadd.s32 %v968, 16
  %v971 = vadd.s32 %v968, 24
  %v972 = vmul.u32 %v934, 8
  %vm973 = vcmp.ge.s32.totalorder %v968, %v972
  %vm974 = vcmp.ge.s32.totalorder %v969, %v972
  %vm975 = vcmp.ge.s32.totalorder %v970, %v972
  %vm976 = vcmp.ge.s32.totalorder %v971, %v972
  %v977 = vadd.s32 %v934, 1
  %v978 = vmul.u32 %v977, 8
  %vm979 = vcmp.lt.s32.totalorder %v968, %v978
  %vm980 = vcmp.lt.s32.totalorder %v969, %v978
  %vm981 = vcmp.lt.s32.totalorder %v970, %v978
  %vm982 = vcmp.lt.s32.totalorder %v971, %v978
  %vm983 = vmand %vm973, %vm979
  %vm984 = vmand %vm974, %vm980
  %vm985 = vmand %vm975, %vm981
  %vm986 = vmand %vm976, %vm982
  %v987 = vsel %vm983, 1, 0
  %v988 = vsel %vm984, 1, 0
  %v989 = vsel %vm985, 1, 0
  %v990 = vsel %vm986, 1, 0
  %v991 = vcvt.s32.f32 %v987
  %v992 = vcvt.s32.f32 %v988
  %v993 = vcvt.s32.f32 %v989
  %v994 = vcvt.s32.f32 %v990
  %v995 = vmul.f32 %v923, %v964
  %v996 = vmul.f32 %v927, %v965
  %v997 = vmul.f32 %v931, %v966
  %v999 = vsel %vm416, %v995, 0
  %v1002 = vsel %vm416, %v996, 0
  %v1005 = vsel %vm416, %v997, 0
  %1007 = vmatpush.msra.mxu0 0.0
  %1008 = vmatpush.msra.mxu0 0.0
  %1009 = vmatpush.msra.mxu0 0.0
  %1010 = vmatpush.msra.mxu0 0.0
  %1011 = vmatpush.msra.mxu0 0.0
  %1012 = vmatpush.msra.mxu0 0.0
  %1013 = vmatpush.msra.mxu0 0.0
  %1014 = vmatpush.msra.mxu0 0.0
  %1015 = vmatpush.msra.mxu0 0.0
  %1016 = vmatpush.msra.mxu0 0.0
  %1017 = vmatpush.msra.mxu0 0.0
  %1018 = vmatpush.msra.mxu0 0.0
  %v1019 = vand.u32 %v994, 4294901760
  %1020 = vmatpush.msra.mxu0 %v1019
  %v1021 = vand.u32 %v993, 4294901760
  %1022 = vmatpush.msra.mxu0 %v1021
  %v1023 = vand.u32 %v992, 4294901760
  %1024 = vmatpush.msra.mxu0 %v1023
  %v1025 = vand.u32 %v991, 4294901760
  %1026 = vmatpush.msra.mxu0 %v1025
  %v1027 = vand.u32 %v999, 4294901760
  %v1028 = vsub.f32 %v999, %v1027
  %v1029 = vand.u32 %v1028, 4294901760
  %v1030 = vsub.f32 %v1028, %v1029
  %v1031 = vand.u32 %v1030, 4294901760
  %1032 = vmatmul.f32.gmra.mxu0 %v1031
  %v1033 = vpop.f32.mrf.mxu0
  %v1034 = vadd.f32 0.0, %v1033
  %v1035 = vand.u32 %v1002, 4294901760
  %v1036 = vsub.f32 %v1002, %v1035
  %v1037 = vand.u32 %v1036, 4294901760
  %v1038 = vsub.f32 %v1036, %v1037
  %v1039 = vand.u32 %v1038, 4294901760
  %1040 = vmatmul.f32.gmra.mxu0 %v1039
  %v1041 = vpop.f32.mrf.mxu0
  %v1042 = vadd.f32 0.0, %v1041
  %v1043 = vand.u32 %v1005, 4294901760
  %v1044 = vsub.f32 %v1005, %v1043
  %v1045 = vand.u32 %v1044, 4294901760
  %v1046 = vsub.f32 %v1044, %v1045
  %v1047 = vand.u32 %v1046, 4294901760
  %1048 = vmatmul.f32.gmra.mxu0 %v1047
  %v1049 = vpop.f32.mrf.mxu0
  %v1050 = vadd.f32 0.0, %v1049
  %1051 = vdwg.mxu0
  %1052 = vmatpush.msra.mxu0 0.0
  %1053 = vmatpush.msra.mxu0 0.0
  %1054 = vmatpush.msra.mxu0 0.0
  %1055 = vmatpush.msra.mxu0 0.0
  %1056 = vmatpush.msra.mxu0 0.0
  %1057 = vmatpush.msra.mxu0 0.0
  %1058 = vmatpush.msra.mxu0 0.0
  %1059 = vmatpush.msra.mxu0 0.0
  %1060 = vmatpush.msra.mxu0 0.0
  %1061 = vmatpush.msra.mxu0 0.0
  %1062 = vmatpush.msra.mxu0 0.0
  %1063 = vmatpush.msra.mxu0 0.0
  %v1064 = vand.u32 %v994, 4294901760
  %v1065 = vsub.f32 %v994, %v1064
  %v1066 = vand.u32 %v1065, 4294901760
  %v1067 = vsub.f32 %v1065, %v1066
  %v1068 = vand.u32 %v1067, 4294901760
  %1069 = vmatpush.msra.mxu0 %v1068
  %v1070 = vand.u32 %v993, 4294901760
  %v1071 = vsub.f32 %v993, %v1070
  %v1072 = vand.u32 %v1071, 4294901760
  %v1073 = vsub.f32 %v1071, %v1072
  %v1074 = vand.u32 %v1073, 4294901760
  %1075 = vmatpush.msra.mxu0 %v1074
  %v1076 = vand.u32 %v992, 4294901760
  %v1077 = vsub.f32 %v992, %v1076
  %v1078 = vand.u32 %v1077, 4294901760
  %v1079 = vsub.f32 %v1077, %v1078
  %v1080 = vand.u32 %v1079, 4294901760
  %1081 = vmatpush.msra.mxu0 %v1080
  %v1082 = vand.u32 %v991, 4294901760
  %v1083 = vsub.f32 %v991, %v1082
  %v1084 = vand.u32 %v1083, 4294901760
  %v1085 = vsub.f32 %v1083, %v1084
  %v1086 = vand.u32 %v1085, 4294901760
  %1087 = vmatpush.msra.mxu0 %v1086
  %v1088 = vand.u32 %v999, 4294901760
  %1089 = vmatmul.f32.gmra.mxu0 %v1088
  %v1090 = vpop.f32.mrf.mxu0
  %v1091 = vadd.f32 %v1034, %v1090
  %v1092 = vand.u32 %v1002, 4294901760
  %1093 = vmatmul.f32.gmra.mxu0 %v1092
  %v1094 = vpop.f32.mrf.mxu0
  %v1095 = vadd.f32 %v1042, %v1094
  %v1096 = vand.u32 %v1005, 4294901760
  %1097 = vmatmul.f32.gmra.mxu0 %v1096
  %v1098 = vpop.f32.mrf.mxu0
  %v1099 = vadd.f32 %v1050, %v1098
  %1100 = vdwg.mxu0
  %1101 = vmatpush.msra.mxu0 0.0
  %1102 = vmatpush.msra.mxu0 0.0
  %1103 = vmatpush.msra.mxu0 0.0
  %1104 = vmatpush.msra.mxu0 0.0
  %1105 = vmatpush.msra.mxu0 0.0
  %1106 = vmatpush.msra.mxu0 0.0
  %1107 = vmatpush.msra.mxu0 0.0
  %1108 = vmatpush.msra.mxu0 0.0
  %1109 = vmatpush.msra.mxu0 0.0
  %1110 = vmatpush.msra.mxu0 0.0
  %1111 = vmatpush.msra.mxu0 0.0
  %1112 = vmatpush.msra.mxu0 0.0
  %v1113 = vand.u32 %v994, 4294901760
  %v1114 = vsub.f32 %v994, %v1113
  %1115 = vmatpush.msra.mxu0 %v1114
  %v1116 = vand.u32 %v993, 4294901760
  %v1117 = vsub.f32 %v993, %v1116
  %1118 = vmatpush.msra.mxu0 %v1117
  %v1119 = vand.u32 %v992, 4294901760
  %v1120 = vsub.f32 %v992, %v1119
  %1121 = vmatpush.msra.mxu0 %v1120
  %v1122 = vand.u32 %v991, 4294901760
  %v1123 = vsub.f32 %v991, %v1122
  %1124 = vmatpush.msra.mxu0 %v1123
  %v1125 = vand.u32 %v999, 4294901760
  %v1126 = vsub.f32 %v999, %v1125
  %1127 = vmatmul.f32.gmra.mxu0 %v1126
  %v1128 = vpop.f32.mrf.mxu0
  %v1129 = vadd.f32 %v1091, %v1128
  %v1130 = vand.u32 %v1002, 4294901760
  %v1131 = vsub.f32 %v1002, %v1130
  %1132 = vmatmul.f32.gmra.mxu0 %v1131
  %v1133 = vpop.f32.mrf.mxu0
  %v1134 = vadd.f32 %v1095, %v1133
  %v1135 = vand.u32 %v1005, 4294901760
  %v1136 = vsub.f32 %v1005, %v1135
  %1137 = vmatmul.f32.gmra.mxu0 %v1136
  %v1138 = vpop.f32.mrf.mxu0
  %v1139 = vadd.f32 %v1099, %v1138
  %1140 = vdwg.mxu0
  %1141 = vmatpush.msra.mxu0 0.0
  %1142 = vmatpush.msra.mxu0 0.0
  %1143 = vmatpush.msra.mxu0 0.0
  %1144 = vmatpush.msra.mxu0 0.0
  %1145 = vmatpush.msra.mxu0 0.0
  %1146 = vmatpush.msra.mxu0 0.0
  %1147 = vmatpush.msra.mxu0 0.0
  %1148 = vmatpush.msra.mxu0 0.0
  %1149 = vmatpush.msra.mxu0 0.0
  %1150 = vmatpush.msra.mxu0 0.0
  %1151 = vmatpush.msra.mxu0 0.0
  %1152 = vmatpush.msra.mxu0 0.0
  %v1153 = vand.u32 %v994, 4294901760
  %1154 = vmatpush.msra.mxu0 %v1153
  %v1155 = vand.u32 %v993, 4294901760
  %1156 = vmatpush.msra.mxu0 %v1155
  %v1157 = vand.u32 %v992, 4294901760
  %1158 = vmatpush.msra.mxu0 %v1157
  %v1159 = vand.u32 %v991, 4294901760
  %1160 = vmatpush.msra.mxu0 %v1159
  %v1161 = vand.u32 %v999, 4294901760
  %v1162 = vsub.f32 %v999, %v1161
  %v1163 = vand.u32 %v1162, 4294901760
  %1164 = vmatmul.f32.gmra.mxu0 %v1163
  %v1165 = vpop.f32.mrf.mxu0
  %v1166 = vadd.f32 %v1129, %v1165
  %v1167 = vand.u32 %v1002, 4294901760
  %v1168 = vsub.f32 %v1002, %v1167
  %v1169 = vand.u32 %v1168, 4294901760
  %1170 = vmatmul.f32.gmra.mxu0 %v1169
  %v1171 = vpop.f32.mrf.mxu0
  %v1172 = vadd.f32 %v1134, %v1171
  %v1173 = vand.u32 %v1005, 4294901760
  %v1174 = vsub.f32 %v1005, %v1173
  %v1175 = vand.u32 %v1174, 4294901760
  %1176 = vmatmul.f32.gmra.mxu0 %v1175
  %v1177 = vpop.f32.mrf.mxu0
  %v1178 = vadd.f32 %v1139, %v1177
  %1179 = vdwg.mxu0
  %1180 = vmatpush.msra.mxu0 0.0
  %1181 = vmatpush.msra.mxu0 0.0
  %1182 = vmatpush.msra.mxu0 0.0
  %1183 = vmatpush.msra.mxu0 0.0
  %1184 = vmatpush.msra.mxu0 0.0
  %1185 = vmatpush.msra.mxu0 0.0
  %1186 = vmatpush.msra.mxu0 0.0
  %1187 = vmatpush.msra.mxu0 0.0
  %1188 = vmatpush.msra.mxu0 0.0
  %1189 = vmatpush.msra.mxu0 0.0
  %1190 = vmatpush.msra.mxu0 0.0
  %1191 = vmatpush.msra.mxu0 0.0
  %v1192 = vand.u32 %v994, 4294901760
  %v1193 = vsub.f32 %v994, %v1192
  %v1194 = vand.u32 %v1193, 4294901760
  %1195 = vmatpush.msra.mxu0 %v1194
  %v1196 = vand.u32 %v993, 4294901760
  %v1197 = vsub.f32 %v993, %v1196
  %v1198 = vand.u32 %v1197, 4294901760
  %1199 = vmatpush.msra.mxu0 %v1198
  %v1200 = vand.u32 %v992, 4294901760
  %v1201 = vsub.f32 %v992, %v1200
  %v1202 = vand.u32 %v1201, 4294901760
  %1203 = vmatpush.msra.mxu0 %v1202
  %v1204 = vand.u32 %v991, 4294901760
  %v1205 = vsub.f32 %v991, %v1204
  %v1206 = vand.u32 %v1205, 4294901760
  %1207 = vmatpush.msra.mxu0 %v1206
  %v1208 = vand.u32 %v999, 4294901760
  %1209 = vmatmul.f32.gmra.mxu0 %v1208
  %v1210 = vpop.f32.mrf.mxu0
  %v1211 = vadd.f32 %v1166, %v1210
  %v1212 = vand.u32 %v1002, 4294901760
  %1213 = vmatmul.f32.gmra.mxu0 %v1212
  %v1214 = vpop.f32.mrf.mxu0
  %v1215 = vadd.f32 %v1172, %v1214
  %v1216 = vand.u32 %v1005, 4294901760
  %1217 = vmatmul.f32.gmra.mxu0 %v1216
  %v1218 = vpop.f32.mrf.mxu0
  %v1219 = vadd.f32 %v1178, %v1218
  %1220 = vdwg.mxu0
  %1221 = vmatpush.msra.mxu0 0.0
  %1222 = vmatpush.msra.mxu0 0.0
  %1223 = vmatpush.msra.mxu0 0.0
  %1224 = vmatpush.msra.mxu0 0.0
  %1225 = vmatpush.msra.mxu0 0.0
  %1226 = vmatpush.msra.mxu0 0.0
  %1227 = vmatpush.msra.mxu0 0.0
  %1228 = vmatpush.msra.mxu0 0.0
  %1229 = vmatpush.msra.mxu0 0.0
  %1230 = vmatpush.msra.mxu0 0.0
  %1231 = vmatpush.msra.mxu0 0.0
  %1232 = vmatpush.msra.mxu0 0.0
  %v1233 = vand.u32 %v994, 4294901760
  %1234 = vmatpush.msra.mxu0 %v1233
  %v1235 = vand.u32 %v993, 4294901760
  %1236 = vmatpush.msra.mxu0 %v1235
  %v1237 = vand.u32 %v992, 4294901760
  %1238 = vmatpush.msra.mxu0 %v1237
  %v1239 = vand.u32 %v991, 4294901760
  %1240 = vmatpush.msra.mxu0 %v1239
  %v1241 = vand.u32 %v999, 4294901760
  %1242 = vmatmul.f32.gmra.mxu0 %v1241
  %v1243 = vpop.f32.mrf.mxu0
  %v1244 = vadd.f32 %v1211, %v1243
  %v1245 = vand.u32 %v1002, 4294901760
  %1246 = vmatmul.f32.gmra.mxu0 %v1245
  %v1247 = vpop.f32.mrf.mxu0
  %v1248 = vadd.f32 %v1215, %v1247
  %v1249 = vand.u32 %v1005, 4294901760
  %1250 = vmatmul.f32.gmra.mxu0 %v1249
  %v1251 = vpop.f32.mrf.mxu0
  %v1252 = vadd.f32 %v1219, %v1251
  %1253 = vdwg.mxu0
  %1255 = vrot.lane.b32.xlu0 %v927, 32
  %v1256 = vpop.permute.xlu0 %1255
  %1259 = vrot.lane.b32.xlu0 %v931, 64
  %v1260 = vpop.permute.xlu0 %1259
  %1263 = vrot.lane.b32.xlu0 %v1244, 96
  %v1264 = vpop.permute.xlu0 %1263
  %1267 = vrot.lane.b32.xlu0 %v1248, 100
  %v1268 = vpop.permute.xlu0 %1267
  %1271 = vrot.lane.b32.xlu0 %v1252, 104
  %v1272 = vpop.permute.xlu0 %1271
  %v1274 = vsel %vm416, %v923, %v1256
  %vm1275 = vcmask 523264
  %v1276 = vsel %vm1275, %v1274, %v1260
  %vm1277 = vcmask 785408
  %v1278 = vsel %vm1277, %v1276, %v1264
  %vm1279 = vcmask 818176
  %v1280 = vsel %vm1279, %v1278, %v1268
  %vm1281 = vcmask 850944
  %v1282 = vsel %vm1281, %v1280, %v1272
  %vm1283 = vcmask 883712
  %v1284 = vsel %vm1283, %v1282, 0.0
  %1285 = vst [vmem:[%s2] sm:$0xff] %v1284
  // Predicated region
  $region10: #{c2f_critic_forward.1} parent=0 // pred_check
    _
  $region11: #{c2f_critic_forward.1} parent=0 // pred_check_branch
    %1287 = sbr.rel (0) target = $region13
  $region12: #{c2f_critic_forward.1} parent=0 // pred_region
    _
  $region13: #{c2f_critic_forward.1} parent=0 // pred_fallthru
    _
  // Predicated region
  $region14: #{c2f_critic_forward.1} parent=0 // pred_check
    _
  $region15: #{c2f_critic_forward.1} parent=0 // pred_check_branch
    %1289 = sbr.rel (0) target = $region17
  $region16: #{c2f_critic_forward.1} parent=0 // pred_region
    _
  $region17: #{c2f_critic_forward.1} parent=0 // pred_fallthru
    _

</llo_original>
